<compile_context>
chip_gen: v5e
topology: v5e:2x2
jax: 0.10.0
libtpu: 0.0.40
codegen_flags: <defaults>
</compile_context>

<pallas_src>
import jax
import jax.numpy as jnp
from jax import lax
from jax.experimental import pallas as pl
from jax.experimental.pallas import tpu as pltpu

LANES = 128
SUBLANES = 8
CHUNK_ROWS = 64        # inner-loop rows; multiple of both f32 (8,.) and bf16 (16,.) tiles
MAX_TILE_ROWS = 4096   # (4096,128) f32 = 2 MiB/block; 2 inputs x 2 buffers = 8 MiB VMEM

# Pad values chosen so padded elements contribute exactly zero to the sum:
#   max(100,0) - 100*1 + log1p(exp(-100)) == 0 exactly in f32.
PAD_LOGIT = 100.0
PAD_LABEL = 1.0


def _round_up(a: int, b: int) -> int:
    return -(-a // b) * b


def _padded_layout(n: int):
    """(total_rows, tile_rows, grid_steps) of the lane-dense (rows, 128) slab."""
    rows = _round_up(max(-(-n // LANES), 1), CHUNK_ROWS)
    if rows <= MAX_TILE_ROWS:
        return rows, rows, 1
    grid = -(-rows // MAX_TILE_ROWS)
    tile_rows = _round_up(-(-rows // grid), CHUNK_ROWS)
    return tile_rows * grid, tile_rows, grid


def _pad_to_slab(v: jax.Array, rows: int, pad_value: float, dtype) -> jax.Array:
    flat = jnp.ravel(v).astype(dtype)
    return jnp.pad(flat, (0, rows * LANES - flat.size),
                   constant_values=pad_value).reshape(rows, LANES)


def _make_bce_kernel(n: int, tile_rows: int):
    """Kernel closure over the (static) true element count and tile size."""
    inv_n = 1.0 / n
    n_chunks = tile_rows // CHUNK_ROWS
    unroll = n_chunks <= 8

    def kernel(logits_ref, labels_ref, out_ref, acc_ref):
        pid = pl.program_id(0)

        @pl.when(pid == 0)
        def _init():
            acc_ref[...] = jnp.zeros_like(acc_ref)

        def body(c, acc):
            r = pl.multiple_of(c * CHUNK_ROWS, CHUNK_ROWS)
            x = logits_ref[pl.ds(r, CHUNK_ROWS), :].astype(jnp.float32)
            y = labels_ref[pl.ds(r, CHUNK_ROWS), :].astype(jnp.float32)
            # Numerically stable BCE-with-logits (identical to PyTorch):
            #   max(x, 0) - x*y + log1p(exp(-|x|))
            return acc + (jnp.maximum(x, 0.0) - x * y
                          + jnp.log1p(jnp.exp(-jnp.abs(x))))

        part = lax.fori_loop(0, n_chunks, body,
                             jnp.zeros((CHUNK_ROWS, LANES), jnp.float32),
                             unroll=unroll)
        acc_ref[...] += part.reshape(
            CHUNK_ROWS // SUBLANES, SUBLANES, LANES).sum(axis=0)

        @pl.when(pid == pl.num_programs(0) - 1)
        def _finalize():
            out_ref[0, 0] = jnp.sum(acc_ref[...]) * jnp.float32(inv_n)

    return kernel


@jax.jit
def _bce_with_logits_mean(logits: jax.Array, label_slab: jax.Array) -> jax.Array:
    """mean(BCEWithLogits(logits, labels)); labels arrive as a pre-padded slab."""
    n = logits.size
    if n == 0:
        # TODO(synk): PyTorch mean over an empty batch is NaN; mirror that.
        return jnp.float32(jnp.nan)

    rows, tile_rows, grid = _padded_layout(n)
    assert label_slab.shape == (rows, LANES), (label_slab.shape, rows)

    # Keep bf16 logits on the wire; everything else streams as f32.
    x_dtype = logits.dtype if logits.dtype == jnp.bfloat16 else jnp.float32
    x = _pad_to_slab(logits, rows, PAD_LOGIT, x_dtype)

    out = pl.pallas_call(
        _make_bce_kernel(n, tile_rows),
        out_shape=jax.ShapeDtypeStruct((1, 1), jnp.float32),
        grid_spec=pltpu.PrefetchScalarGridSpec(
            num_scalar_prefetch=0,
            grid=(grid,),
            in_specs=[
                pl.BlockSpec((tile_rows, LANES), lambda i: (i, 0)),
                pl.BlockSpec((tile_rows, LANES), lambda i: (i, 0)),
            ],
            out_specs=pl.BlockSpec(memory_space=pltpu.MemorySpace.SMEM),
            scratch_shapes=[pltpu.VMEM((SUBLANES, LANES), jnp.float32)],
        ),
        compiler_params=pltpu.CompilerParams(
            dimension_semantics=("arbitrary",)),
    )(x, label_slab)
    return out[0, 0]


class GeneratorLogitsLoss:
    """JAX/Pallas port of labml_nn.gan.original.GeneratorLogitsLoss."""

    def __init__(self, smoothing: float = 0.2, key=None):
        self.smoothing = smoothing
        self._key = key if key is not None else jax.random.PRNGKey(0)
        self._key, sub = jax.random.split(self._key)
        # Equivalent of the registered buffer: Uniform(1 - smoothing, 1.0), (256, 1).
        self.fake_labels = jax.random.uniform(
            sub, (256, 1), dtype=jnp.float32,
            minval=1.0 - smoothing, maxval=1.0)
        # Cache of padded f32 label slabs keyed by n (labels only change when the
        # buffer regrows), so the label pad/cast is not re-materialized per call.
        self._label_slabs = {}

    def _label_slab(self, n: int) -> jax.Array:
        slab = self._label_slabs.get(n)
        if slab is None:
            rows, _, _ = _padded_layout(n)
            slab = _pad_to_slab(self.fake_labels[:n], rows, PAD_LABEL, jnp.float32)
            self._label_slabs[n] = slab
        return slab

    def __call__(self, logits: jax.Array) -> jax.Array:
        n = logits.shape[0]
        if n > self.fake_labels.shape[0]:
            # Mirrors the PyTorch branch that regrows the label buffer.
            self._key, sub = jax.random.split(self._key)
            self.fake_labels = jax.random.uniform(
                sub, (n, 1), dtype=jnp.float32,
                minval=1.0 - self.smoothing, maxval=1.0)
            self._label_slabs.clear()
        return _bce_with_logits_mean(logits, self._label_slab(n))


def _reference_loss(logits, labels):
    x = logits.astype(jnp.float32)
    y = labels.astype(jnp.float32).reshape(x.shape)
    return jnp.mean(jnp.maximum(x, 0.0) - x * y + jnp.log1p(jnp.exp(-jnp.abs(x))))


if __name__ == "__main__":
    key = jax.random.PRNGKey(0)
    k_logits, k_logits2, k_logits3, k_module = jax.random.split(key, 4)

    loss_fn = GeneratorLogitsLoss(smoothing=0.2, key=k_module)

    # Small discriminator-logit batch: (batch=16, 1).
    logits = jax.random.normal(k_logits, (16, 1), dtype=jnp.float32)
    loss = jax.block_until_ready(loss_fn(logits))
    ref = _reference_loss(logits, loss_fn.fake_labels[:16])
    assert jnp.allclose(loss, ref, atol=1e-5, rtol=1e-5), (loss, ref)

    # Larger-than-buffer batch: exercises buffer regrowth + lane-slab padding.
    logits2 = jax.random.normal(k_logits2, (300, 1), dtype=jnp.float32)
    loss2 = jax.block_until_ready(loss_fn(logits2))
    ref2 = _reference_loss(logits2, loss_fn.fake_labels[:300])
    assert jnp.allclose(loss2, ref2, atol=1e-5, rtol=1e-5), (loss2, ref2)

    # bf16 logits stream straight to the kernel without a host upcast.
    logits3 = jax.random.normal(k_logits3, (32, 1), dtype=jnp.bfloat16)
    loss3 = jax.block_until_ready(loss_fn(logits3))
    ref3 = _reference_loss(logits3, loss_fn.fake_labels[:32])
    assert jnp.allclose(loss3, ref3, atol=1e-5, rtol=1e-5), (loss3, ref3)

    print("KERNEL_OK")
</pallas_src>

<mosaic_0001>
module attributes {stable_mosaic.version = 11 : i64} {
  func.func @kernel(%arg0: i32, %arg1: memref<64x128xf32, #tpu.memory_space<vmem>>, %arg2: memref<64x128xf32, #tpu.memory_space<vmem>>, %arg3: memref<1x1xf32, #tpu.memory_space<smem>>, %arg4: memref<8x128xf32, #tpu.memory_space<vmem>>) attributes {dimension_semantics = [#tpu.dimension_semantics<arbitrary>], iteration_bounds = array<i64: 1>, scalar_prefetch = 0 : i64, scratch_operands = 1 : i64, tpu.core_type = #tpu.core_type<tc>, window_params = [{transform_indices = @transform_0, window_bounds = array<i64: 64, 128>}, {transform_indices = @transform_1, window_bounds = array<i64: 64, 128>}, {transform_indices = @transform_2, window_bounds = array<i64: 1, 1>}]} {
    %c0_i32 = arith.constant 0 : i32
    %0 = arith.cmpi eq, %arg0, %c0_i32 : i32
    %1 = arith.extui %0 : i1 to i32
    %c0_i32_0 = arith.constant 0 : i32
    %2 = arith.cmpi ne, %1, %c0_i32_0 : i32
    scf.if %2 {
      %cst_12 = arith.constant 0.000000e+00 : f32
      %29 = vector.broadcast %cst_12 : f32 to vector<8x128xf32>
      %c0_13 = arith.constant 0 : index
      %c0_14 = arith.constant 0 : index
      %30 = vector.load %arg4[%c0_13, %c0_14] : memref<8x128xf32, #tpu.memory_space<vmem>>, vector<8x128xf32>
      tpu.vector_store %arg4[%c0_13, %c0_14], %29 {strides = array<i32>} : memref<8x128xf32, #tpu.memory_space<vmem>>, vector<8x128xf32>,
    } else {
    }
    %cst = arith.constant 0.000000e+00 : f32
    %3 = vector.broadcast %cst : f32 to vector<64x128xf32>
    %c0_i32_1 = arith.constant 0 : i32
    %c64_i32 = arith.constant 64 : i32
    %4 = arith.muli %c0_i32_1, %c64_i32 : i32
    %5 = tpu.assume_multiple %4, 64 : i32
    %6 = arith.index_cast %5 : i32 to index
    %c0 = arith.constant 0 : index
    %7 = vector.load %arg1[%6, %c0] : memref<64x128xf32, #tpu.memory_space<vmem>>, vector<64x128xf32>
    %8 = arith.index_cast %5 : i32 to index
    %c0_2 = arith.constant 0 : index
    %9 = vector.load %arg2[%8, %c0_2] : memref<64x128xf32, #tpu.memory_space<vmem>>, vector<64x128xf32>
    %cst_3 = arith.constant 0.000000e+00 : f32
    %10 = vector.broadcast %cst_3 : f32 to vector<64x128xf32>
    %11 = arith.maximumf %7, %10 : vector<64x128xf32>
    %12 = arith.mulf %7, %9 : vector<64x128xf32>
    %13 = arith.subf %11, %12 : vector<64x128xf32>
    %14 = math.absf %7 : vector<64x128xf32>
    %cst_4 = arith.constant 0.000000e+00 : f32
    %15 = vector.broadcast %cst_4 : f32 to vector<64x128xf32>
    %16 = arith.subf %15, %14 : vector<64x128xf32>
    %17 = math.exp %16 : vector<64x128xf32>
    %18 = math.log1p %17 : vector<64x128xf32>
    %19 = arith.addf %13, %18 : vector<64x128xf32>
    %20 = arith.addf %3, %19 : vector<64x128xf32>
    %c1_i32 = arith.constant 1 : i32
    %c0_5 = arith.constant 0 : index
    %c0_6 = arith.constant 0 : index
    %21 = vector.load %arg4[%c0_5, %c0_6] : memref<8x128xf32, #tpu.memory_space<vmem>>, vector<8x128xf32>
    %22 = vector.shape_cast %20 : vector<64x128xf32> to vector<8x8x128xf32>
    %cst_7 = arith.constant dense<0.000000e+00> : vector<8x128xf32>
    %23 = vector.multi_reduction <add>, %22, %cst_7 [0] : vector<8x8x128xf32> to vector<8x128xf32>
    %24 = arith.addf %21, %23 : vector<8x128xf32>
    %c0_8 = arith.constant 0 : index
    %c0_9 = arith.constant 0 : index
    %25 = vector.load %arg4[%c0_8, %c0_9] : memref<8x128xf32, #tpu.memory_space<vmem>>, vector<8x128xf32>
    tpu.vector_store %arg4[%c0_8, %c0_9], %24 {strides = array<i32>} : memref<8x128xf32, #tpu.memory_space<vmem>>, vector<8x128xf32>,
    %c0_i32_10 = arith.constant 0 : i32
    %26 = arith.cmpi eq, %arg0, %c0_i32_10 : i32
    %27 = arith.extui %26 : i1 to i32
    %c0_i32_11 = arith.constant 0 : i32
    %28 = arith.cmpi ne, %27, %c0_i32_11 : i32
    scf.if %28 {
      %c0_12 = arith.constant 0 : index
      %c0_13 = arith.constant 0 : index
      %29 = vector.load %arg4[%c0_12, %c0_13] : memref<8x128xf32, #tpu.memory_space<vmem>>, vector<8x128xf32>
      %30 = vector.shape_cast %29 : vector<8x128xf32> to vector<1x8x128xf32>
      %cst_14 = arith.constant dense<0.000000e+00> : vector<1xf32>
      %31 = vector.multi_reduction <add>, %30, %cst_14 [1, 2] : vector<1x8x128xf32> to vector<1xf32>
      %32 = vector.shape_cast %31 : vector<1xf32> to vector<1x1x1xf32>
      %33 = vector.extract %32[0, 0, 0] : f32 from vector<1x1x1xf32>
      %cst_15 = arith.constant 6.250000e-02 : f32
      %34 = arith.mulf %33, %cst_15 : f32
      %c0_16 = arith.constant 0 : index
      %c0_17 = arith.constant 0 : index
      %35 = memref.load %arg3[%c0_16, %c0_17] : memref<1x1xf32, #tpu.memory_space<smem>>
      memref.store %34, %arg3[%c0_16, %c0_17] : memref<1x1xf32, #tpu.memory_space<smem>>
    } else {
    }
    return
  }
  func.func @transform_0(%arg0: i32) -> (i32, i32) {
    %c0_i32 = arith.constant 0 : i32
    %c0_i32_0 = arith.constant 0 : i32
    return %arg0, %c0_i32 : i32, i32
  }
  func.func @transform_1(%arg0: i32) -> (i32, i32) {
    %c0_i32 = arith.constant 0 : i32
    %c0_i32_0 = arith.constant 0 : i32
    return %arg0, %c0_i32 : i32, i32
  }
  func.func @transform_2(%arg0: i32) -> (i32, i32) {
    %c0_i32 = arith.constant 0 : i32
    %c0_i32_0 = arith.constant 0 : i32
    %c0_i32_1 = arith.constant 0 : i32
    return %c0_i32, %c0_i32_0 : i32, i32
  }
}

</mosaic_0001>

<llo_original>
// kernel: _bce_with_logits_mean.1
$region0: #{_bce_with_logits_mean.1}
  #allocation0 [shape = 'u32[]', space=smem, size = 0x4, offset = 0x4, fixed_abs, tag = 'smem constant byte address 0x4 - core index']
  #allocation1 [shape = 'u32[72,128]{1,0:T(1,128)}', space=vmem, size = 0x9000, scoped, tag = 'internal scratch']
  #allocation2 [shape = 'f32[8,128]{1,0:T(8,128)}', space=vmem, size = 0x1000, scoped, tag = 'scratch operand']
  %s0 = inlined_call_operand.vmem [shape: f32[64,128], index: 0, kind: input, shape index: {}]
  %s1 = inlined_call_operand.vmem [shape: f32[64,128], index: 1, kind: input, shape index: {}]
  %s2 = inlined_call_operand.hbm [shape: f32[1,1], index: 2, kind: output, shape index: {}]
  %s3 = sld [smem:[#allocation0]]
  $region26: #{_bce_with_logits_mean.1} parent=0
    _
  %s5 = ssub.s32 1, %s3
  %s6 = scalar_select 0, %s5, %s3
  $region1: #{_bce_with_logits_mean.1} parent=0
    #allocation3 [shape = 'u8[512]{0}', space=smem, size = 0x200, scoped, tag = 'output window, operand 0, single buffered']
    #allocation4 [shape = 's32[1]{0}', space=sflag, size = 0x4, scoped, tag = 'scoped memory for _bce_with_logits_mean.1']
    %7 = vsyncpa [#allocation4], 0
    // Predicated region
    $region2: #{_bce_with_logits_mean.1} parent=1 // pred_check
      _
    $region3: #{_bce_with_logits_mean.1} parent=1 // pred_check_branch
      %9 = sbr.rel (0) target = $region5
    $region4: #{_bce_with_logits_mean.1} parent=1 // pred_region
      _
    $region5: #{_bce_with_logits_mean.1} parent=1 // pred_fallthru
      _
    // Predicated region
    $region6: #{_bce_with_logits_mean.1} parent=1 // pred_check
      _
    $region7: #{_bce_with_logits_mean.1} parent=1 // pred_check_branch
      %11 = sbr.rel (0) target = $region9
    $region8: #{_bce_with_logits_mean.1} parent=1 // pred_region
      _
    $region9: #{_bce_with_logits_mean.1} parent=1 // pred_fallthru
      _
    %p12 = scmp.eq.s32.totalorder 0, 0
    // Predicated region
    $region10: #{_bce_with_logits_mean.1} parent=1 // pred_check
      %p13 = pneg %p12
    $region11: #{_bce_with_logits_mean.1} parent=1 // pred_check_branch
      %15 = sbr.rel (%p13) target = $region13
    $region12: #{_bce_with_logits_mean.1} parent=1 // pred_region
      %16 = vst [vmem:[#allocation2] sm:$0xff] 0.0
    $region13: #{_bce_with_logits_mean.1} parent=1 // pred_fallthru
      _
    %v17 = vld [vmem:[%s0] sm:$0xff]
    %v18 = vld [vmem:[%s0 + $0x8] sm:$0xff]
    %v19 = vld [vmem:[%s0 + $0x10] sm:$0xff]
    %v20 = vld [vmem:[%s0 + $0x18] sm:$0xff]
    %v21 = vld [vmem:[%s0 + $0x20] sm:$0xff]
    %v22 = vld [vmem:[%s0 + $0x28] sm:$0xff]
    %v23 = vld [vmem:[%s0 + $0x30] sm:$0xff]
    %v24 = vld [vmem:[%s0 + $0x38] sm:$0xff]
    %v25 = vld [vmem:[%s1] sm:$0xff]
    %v26 = vld [vmem:[%s1 + $0x8] sm:$0xff]
    %v27 = vld [vmem:[%s1 + $0x10] sm:$0xff]
    %v28 = vld [vmem:[%s1 + $0x18] sm:$0xff]
    %v29 = vld [vmem:[%s1 + $0x20] sm:$0xff]
    %v30 = vld [vmem:[%s1 + $0x28] sm:$0xff]
    %v31 = vld [vmem:[%s1 + $0x30] sm:$0xff]
    %v32 = vld [vmem:[%s1 + $0x38] sm:$0xff]
    %v33 = vmax.f32 %v17, 0.0
    %v34 = vmax.f32 %v18, 0.0
    %v35 = vmax.f32 %v19, 0.0
    %v36 = vmax.f32 %v20, 0.0
    %v37 = vmax.f32 %v21, 0.0
    %v38 = vmax.f32 %v22, 0.0
    %v39 = vmax.f32 %v23, 0.0
    %v40 = vmax.f32 %v24, 0.0
    %v41 = vmul.f32 %v17, %v25
    %v42 = vmul.f32 %v18, %v26
    %v43 = vmul.f32 %v19, %v27
    %v44 = vmul.f32 %v20, %v28
    %v45 = vmul.f32 %v21, %v29
    %v46 = vmul.f32 %v22, %v30
    %v47 = vmul.f32 %v23, %v31
    %v48 = vmul.f32 %v24, %v32
    %v49 = vsub.f32 %v33, %v41
    %v50 = vsub.f32 %v34, %v42
    %v51 = vsub.f32 %v35, %v43
    %v52 = vsub.f32 %v36, %v44
    %v53 = vsub.f32 %v37, %v45
    %v54 = vsub.f32 %v38, %v46
    %v55 = vsub.f32 %v39, %v47
    %v56 = vsub.f32 %v40, %v48
    %v57 = vand.u32 2147483647, %v17
    %v58 = vand.u32 2147483647, %v18
    %v59 = vand.u32 2147483647, %v19
    %v60 = vand.u32 2147483647, %v20
    %v61 = vand.u32 2147483647, %v21
    %v62 = vand.u32 2147483647, %v22
    %v63 = vand.u32 2147483647, %v23
    %v64 = vand.u32 2147483647, %v24
    %v65 = vsub.f32 0.0, %v57
    %v66 = vsub.f32 0.0, %v58
    %v67 = vsub.f32 0.0, %v59
    %v68 = vsub.f32 0.0, %v60
    %v69 = vsub.f32 0.0, %v61
    %v70 = vsub.f32 0.0, %v62
    %v71 = vsub.f32 0.0, %v63
    %v72 = vsub.f32 0.0, %v64
    %v73 = vmul.f32 %v65, 1.442695
    %v74 = vpow.pop %v73
    %v75 = vmul.f32 %v66, 1.442695
    %v76 = vpow.pop %v75
    %v77 = vmul.f32 %v67, 1.442695
    %v78 = vpow.pop %v77
    %v79 = vmul.f32 %v68, 1.442695
    %v80 = vpow.pop %v79
    %v81 = vmul.f32 %v69, 1.442695
    %v82 = vpow.pop %v81
    %v83 = vmul.f32 %v70, 1.442695
    %v84 = vpow.pop %v83
    %v85 = vmul.f32 %v71, 1.442695
    %v86 = vpow.pop %v85
    %v87 = vmul.f32 %v72, 1.442695
    %v88 = vpow.pop %v87
    %v89 = vadd.f32 %v74, 1.0
    %v90 = vlog2.pop %v89
    %v91 = vmul.f32 %v90, 0.6931472
    %v92 = vmul.f32 -0.5, %v74
    %v93 = vadd.f32 %v92, 1.0
    %v94 = vmul.f32 %v93, %v74
    %v95 = vand.u32 2147483647, %v74
    %vm96 = vcmp.lt.f32.partialorder %v95, 0.0004427343
    %v97 = vsel %vm96, %v94, %v91
    %v98 = vadd.f32 %v76, 1.0
    %v99 = vlog2.pop %v98
    %v100 = vmul.f32 %v99, 0.6931472
    %v101 = vmul.f32 -0.5, %v76
    %v102 = vadd.f32 %v101, 1.0
    %v103 = vmul.f32 %v102, %v76
    %v104 = vand.u32 2147483647, %v76
    %vm105 = vcmp.lt.f32.partialorder %v104, 0.0004427343
    %v106 = vsel %vm105, %v103, %v100
    %v107 = vadd.f32 %v78, 1.0
    %v108 = vlog2.pop %v107
    %v109 = vmul.f32 %v108, 0.6931472
    %v110 = vmul.f32 -0.5, %v78
    %v111 = vadd.f32 %v110, 1.0
    %v112 = vmul.f32 %v111, %v78
    %v113 = vand.u32 2147483647, %v78
    %vm114 = vcmp.lt.f32.partialorder %v113, 0.0004427343
    %v115 = vsel %vm114, %v112, %v109
    %v116 = vadd.f32 %v80, 1.0
    %v117 = vlog2.pop %v116
    %v118 = vmul.f32 %v117, 0.6931472
    %v119 = vmul.f32 -0.5, %v80
    %v120 = vadd.f32 %v119, 1.0
    %v121 = vmul.f32 %v120, %v80
    %v122 = vand.u32 2147483647, %v80
    %vm123 = vcmp.lt.f32.partialorder %v122, 0.0004427343
    %v124 = vsel %vm123, %v121, %v118
    %v125 = vadd.f32 %v82, 1.0
    %v126 = vlog2.pop %v125
    %v127 = vmul.f32 %v126, 0.6931472
    %v128 = vmul.f32 -0.5, %v82
    %v129 = vadd.f32 %v128, 1.0
    %v130 = vmul.f32 %v129, %v82
    %v131 = vand.u32 2147483647, %v82
    %vm132 = vcmp.lt.f32.partialorder %v131, 0.0004427343
    %v133 = vsel %vm132, %v130, %v127
    %v134 = vadd.f32 %v84, 1.0
    %v135 = vlog2.pop %v134
    %v136 = vmul.f32 %v135, 0.6931472
    %v137 = vmul.f32 -0.5, %v84
    %v138 = vadd.f32 %v137, 1.0
    %v139 = vmul.f32 %v138, %v84
    %v140 = vand.u32 2147483647, %v84
    %vm141 = vcmp.lt.f32.partialorder %v140, 0.0004427343
    %v142 = vsel %vm141, %v139, %v136
    %v143 = vadd.f32 %v86, 1.0
    %v144 = vlog2.pop %v143
    %v145 = vmul.f32 %v144, 0.6931472
    %v146 = vmul.f32 -0.5, %v86
    %v147 = vadd.f32 %v146, 1.0
    %v148 = vmul.f32 %v147, %v86
    %v149 = vand.u32 2147483647, %v86
    %vm150 = vcmp.lt.f32.partialorder %v149, 0.0004427343
    %v151 = vsel %vm150, %v148, %v145
    %v152 = vadd.f32 %v88, 1.0
    %v153 = vlog2.pop %v152
    %v154 = vmul.f32 %v153, 0.6931472
    %v155 = vmul.f32 -0.5, %v88
    %v156 = vadd.f32 %v155, 1.0
    %v157 = vmul.f32 %v156, %v88
    %v158 = vand.u32 2147483647, %v88
    %vm159 = vcmp.lt.f32.partialorder %v158, 0.0004427343
    %v160 = vsel %vm159, %v157, %v154
    %v161 = vadd.f32 %v49, %v97
    %v162 = vadd.f32 %v50, %v106
    %v163 = vadd.f32 %v51, %v115
    %v164 = vadd.f32 %v52, %v124
    %v165 = vadd.f32 %v53, %v133
    %v166 = vadd.f32 %v54, %v142
    %v167 = vadd.f32 %v55, %v151
    %v168 = vadd.f32 %v56, %v160
    %v169 = vadd.f32 %v161, 0.0
    %v170 = vadd.f32 %v162, 0.0
    %v171 = vadd.f32 %v163, 0.0
    %v172 = vadd.f32 %v164, 0.0
    %v173 = vadd.f32 %v165, 0.0
    %v174 = vadd.f32 %v166, 0.0
    %v175 = vadd.f32 %v167, 0.0
    %v176 = vadd.f32 %v168, 0.0
    %v177 = vld [vmem:[#allocation2] sm:$0xff]
    %v178 = vadd.f32 %v169, %v170
    %v179 = vadd.f32 %v178, %v171
    %v180 = vadd.f32 %v179, %v172
    %v181 = vadd.f32 %v180, %v173
    %v182 = vadd.f32 %v181, %v174
    %v183 = vadd.f32 %v182, %v175
    %v184 = vadd.f32 %v183, %v176
    %v185 = vadd.f32 %v177, %v184
    %186 = vst [vmem:[#allocation2] sm:$0xff] %v185
    // Predicated region
    $region14: #{_bce_with_logits_mean.1} parent=1 // pred_check
      %p187 = pneg %p12
    $region15: #{_bce_with_logits_mean.1} parent=1 // pred_check_branch
      %189 = sbr.rel (%p187) target = $region17
    $region16: #{_bce_with_logits_mean.1} parent=1 // pred_region
      %v190 = vld [vmem:[#allocation2] sm:$0xff]
      %191 = vadd.xlane.f32.xlu0 %v190
      %v192 = vpop.xlane.xlu0 %191
      %v193 = vrot.slane %v192, 4
      %v194 = vadd.f32 %v192, %v193
      %v195 = vrot.slane %v194, 2
      %v196 = vadd.f32 %v194, %v195
      %v197 = vrot.slane %v196, 1
      %v198 = vadd.f32 %v196, %v197
      %s199 = vtos %v198
      %s200 = smul.f32 %s199, 0.0625
      %s201 = scalar_lea.smem [#allocation3], 0
      %202 = sst [smem:[%s201]] %s200
    $region17: #{_bce_with_logits_mean.1} parent=1 // pred_fallthru
      _
    // Predicated region
    $region18: #{_bce_with_logits_mean.1} parent=1 // pred_check
      _
    $region19: #{_bce_with_logits_mean.1} parent=1 // pred_check_branch
      %204 = sbr.rel (0) target = $region21
    $region20: #{_bce_with_logits_mean.1} parent=1 // pred_region
      %206 = vsyncadd [#allocation4], 0
      %s208 = sshll.u32 %s2, 4
      %s209 = int_to_ptr.hbm [resolvable:$true] %s208
      %211 = dma.smem_to_hbm [#allocation3], 16, %s209, [#allocation4]
    $region21: #{_bce_with_logits_mean.1} parent=1 // pred_fallthru
      _
    // Predicated region
    $region22: #{_bce_with_logits_mean.1} parent=1 // pred_check
      _
    $region23: #{_bce_with_logits_mean.1} parent=1 // pred_check_branch
      %213 = sbr.rel (0) target = $region25
    $region24: #{_bce_with_logits_mean.1} parent=1 // pred_region
      %215 = dma.done [#allocation4], 16
    $region25: #{_bce_with_logits_mean.1} parent=1 // pred_fallthru
      _
    %216 = sfence
    %217 = vsyncpa [#allocation4], 1

</llo_original>
